<compile_context>
chip_gen: v5e
topology: v5e:2x2
jax: 0.10.0
libtpu: 0.0.40
codegen_flags: <defaults>
</compile_context>

<pallas_src>
import functools

import jax
import jax.numpy as jnp
from jax import lax
from jax.experimental import pallas as pl
from jax.experimental.pallas import tpu as pltpu

_EPS = 1e-6
_NCORES = 2               # leading "parallel" grid axis (both TCs on megacore)
_LANE = 128
_VMEM_LIMIT = 48 << 20    # safe on v5e/v6e (128 MiB) and v7x (64 MiB) VMEM
_INPUT_BUDGET = 16 << 20  # bytes for 2 inputs x 2 pipeline buffers
_MAX_TD = 8192            # lane-chunk cap: keeps the (B, td) matmul operand
                          # near the 64-vreg budget (avoids spills)


def _cdiv(a, b):
    return -(-a // b)


def _round_up(x, m):
    return _cdiv(x, m) * m


def _pick_chunk(d1, d2, batch, itemsize):
    """Largest lane-multiple D-chunk keeping double-buffered inputs in budget."""
    bpad = max(8, _round_up(batch, 8))                 # sublane padding in VMEM
    max_td = _INPUT_BUDGET // (4 * bpad * itemsize)    # 2 inputs x 2 buffers
    max_td = max(_LANE, (max_td // _LANE) * _LANE)
    dmax = max(_round_up(d1, _LANE), _round_up(d2, _LANE))
    return min(max_td, _MAX_TD, dmax)


def _gram_kernel(a_ref, b_ref, ga_ref, gb_ref, *, nc, n1, n2, d1, d2, td):
    k = pl.program_id(1)
    jc = pl.program_id(0) * nc + k          # global D-chunk index

    @pl.when(k == 0)
    def _init():
        ga_ref[...] = jnp.zeros_like(ga_ref)
        gb_ref[...] = jnp.zeros_like(gb_ref)

    def _accum(x_ref, g_ref, n_chunks, d):
        rem = d % td                         # valid cols in the boundary block
        if rem:
            # Zero the garbage tail of the (single) ragged boundary block,
            # in-place in its VMEM buffer -- runs once per core, so the
            # steady-state chunk body stays select-free.
            @pl.when(jc == n_chunks - 1)
            def _mask_tail():
                x = x_ref[...]
                col = lax.broadcasted_iota(jnp.int32, x.shape, 1)
                x_ref[...] = jnp.where(col < rem, x, jnp.zeros_like(x))

        def body():
            x = x_ref[...]                   # (B, td), native dtype
            if x.dtype != jnp.float32 and x.dtype != jnp.bfloat16:
                x = x.astype(jnp.float32)    # MXU takes f32/bf16 natively
            # (B, B) Gram chunk: contraction over the feature dim (K = td)
            g = lax.dot_general(x, x, (((1,), (1,)), ((), ())),
                                preferred_element_type=jnp.float32)
            g_ref[...] += g[None]

        if n_chunks == _NCORES * nc:         # every grid step is a valid chunk
            body()
        else:                                # skip padding chunks
            pl.when(jc < n_chunks)(body)

    _accum(a_ref, ga_ref, n1, d1)
    _accum(b_ref, gb_ref, n2, d2)


@jax.jit
def diff_loss(input1, input2):
    bsz = input1.shape[0]
    a = input1.reshape(bsz, -1)              # same as torch .view(B, -1)
    b = input2.reshape(bsz, -1)
    d1, d2 = a.shape[1], b.shape[1]

    itemsize = max(jnp.dtype(a.dtype).itemsize, jnp.dtype(b.dtype).itemsize)
    td = _pick_chunk(d1, d2, bsz, itemsize)
    n1 = _cdiv(d1, td)
    n2 = _cdiv(d2, td)
    nc = _cdiv(max(n1, n2), _NCORES)         # D-chunks handled per core

    kernel = functools.partial(_gram_kernel, nc=nc, n1=n1, n2=n2,
                               d1=d1, d2=d2, td=td)

    ga, gb = pl.pallas_call(
        kernel,
        out_shape=(jax.ShapeDtypeStruct((_NCORES, bsz, bsz), jnp.float32),
                   jax.ShapeDtypeStruct((_NCORES, bsz, bsz), jnp.float32)),
        grid_spec=pltpu.PrefetchScalarGridSpec(
            num_scalar_prefetch=0,
            grid=(_NCORES, nc),
            in_specs=[
                # Clamp padding steps to the last real block: the pipeliner
                # sees an unchanged block index and skips the redundant DMA.
                pl.BlockSpec((bsz, td),
                             lambda i, k: (0, jnp.minimum(i * nc + k, n1 - 1))),
                pl.BlockSpec((bsz, td),
                             lambda i, k: (0, jnp.minimum(i * nc + k, n2 - 1))),
            ],
            out_specs=[
                pl.BlockSpec((1, bsz, bsz), lambda i, k: (i, 0, 0)),
                pl.BlockSpec((1, bsz, bsz), lambda i, k: (i, 0, 0)),
            ],
        ),
        compiler_params=pltpu.CompilerParams(
            dimension_semantics=("parallel", "arbitrary"),
            vmem_limit_bytes=_VMEM_LIMIT),
    )(a, b)

    # Tiny (B x B) epilogue (fused under jit): combine per-core partial Grams,
    # normalize by the row norms (Gram diagonals), Frobenius product, mean.
    ga = jnp.sum(ga, axis=0)                              # (B, B) = A A^T
    gb = jnp.sum(gb, axis=0)                              # (B, B) = B B^T
    na = jnp.sqrt(jnp.diagonal(ga))                       # per-row L2 norms
    nb = jnp.sqrt(jnp.diagonal(gb))
    w = 1.0 / ((na + _EPS) * (nb + _EPS))                 # (B,)
    loss = jnp.sum(ga * gb * (w[:, None] * w[None, :]))
    return loss / (float(d1) * float(d2))
    # TODO(synk): pallas_call is not auto-differentiable; wrap diff_loss in
    # jax.custom_vjp before using it as a training loss under jax.grad.


def _diff_loss_ref(input1, input2):
    bsz = input1.shape[0]
    a = input1.reshape(bsz, -1).astype(jnp.float32)
    c = input2.reshape(bsz, -1).astype(jnp.float32)
    a = a / (jnp.linalg.norm(a, axis=1, keepdims=True) + 1e-6)
    c = c / (jnp.linalg.norm(c, axis=1, keepdims=True) + 1e-6)
    m = a.T @ c
    return jnp.mean(m * m)


if __name__ == "__main__":
    key = jax.random.PRNGKey(0)
    k1, k2, k3, k4 = jax.random.split(key, 4)

    # NCHW inputs as the module's callers would pass (e.g. conv feature maps)
    x1 = jax.random.normal(k1, (2, 4, 16, 16), dtype=jnp.float32)
    x2 = jax.random.normal(k2, (2, 4, 16, 16), dtype=jnp.float32)
    loss = jax.block_until_ready(diff_loss(x1, x2))
    ref = jax.block_until_ready(_diff_loss_ref(x1, x2))
    assert jnp.allclose(loss, ref, rtol=1e-5, atol=1e-6), (loss, ref)

    # Ragged feature dims (not multiples of 128) exercise the tail-mask path.
    x3 = jax.random.normal(k3, (2, 3, 11, 13), dtype=jnp.float32)   # D = 429
    x4 = jax.random.normal(k4, (2, 5, 7, 9), dtype=jnp.float32)     # D = 315
    loss2 = jax.block_until_ready(diff_loss(x3, x4))
    ref2 = jax.block_until_ready(_diff_loss_ref(x3, x4))
    assert jnp.allclose(loss2, ref2, rtol=1e-5, atol=1e-6), (loss2, ref2)

    print("KERNEL_OK")
</pallas_src>

<mosaic_0001>
module attributes {stable_mosaic.version = 11 : i64} {
  func.func @_gram_kernel(%arg0: i32, %arg1: i32, %arg2: memref<2x1024xf32, #tpu.memory_space<vmem>>, %arg3: memref<2x1024xf32, #tpu.memory_space<vmem>>, %arg4: memref<1x2x2xf32, #tpu.memory_space<vmem>>, %arg5: memref<1x2x2xf32, #tpu.memory_space<vmem>>) attributes {dimension_semantics = [#tpu.dimension_semantics<parallel>, #tpu.dimension_semantics<arbitrary>], iteration_bounds = array<i64: 2, 1>, scalar_prefetch = 0 : i64, scratch_operands = 0 : i64, tpu.core_type = #tpu.core_type<tc>, window_params = [{transform_indices = @transform_0, window_bounds = array<i64: 2, 1024>}, {transform_indices = @transform_1, window_bounds = array<i64: 2, 1024>}, {transform_indices = @transform_2, window_bounds = array<i64: 1, 2, 2>}, {transform_indices = @transform_3, window_bounds = array<i64: 1, 2, 2>}]} {
    %c1_i32 = arith.constant 1 : i32
    %0 = arith.muli %arg0, %c1_i32 : i32
    %1 = arith.addi %0, %arg1 : i32
    %c0_i32 = arith.constant 0 : i32
    %2 = arith.cmpi eq, %arg1, %c0_i32 : i32
    %3 = arith.extui %2 : i1 to i32
    %c0_i32_0 = arith.constant 0 : i32
    %4 = arith.cmpi ne, %3, %c0_i32_0 : i32
    scf.if %4 {
      %cst = arith.constant 0.000000e+00 : f32
      %11 = vector.broadcast %cst : f32 to vector<1x2x2xf32>
      %c0 = arith.constant 0 : index
      %c0_5 = arith.constant 0 : index
      %c0_6 = arith.constant 0 : index
      %12 = vector.load %arg4[%c0, %c0_5, %c0_6] : memref<1x2x2xf32, #tpu.memory_space<vmem>>, vector<1x2x2xf32>
      tpu.vector_store %arg4[%c0, %c0_5, %c0_6], %11 {strides = array<i32>} : memref<1x2x2xf32, #tpu.memory_space<vmem>>, vector<1x2x2xf32>,
      %cst_7 = arith.constant 0.000000e+00 : f32
      %13 = vector.broadcast %cst_7 : f32 to vector<1x2x2xf32>
      %c0_8 = arith.constant 0 : index
      %c0_9 = arith.constant 0 : index
      %c0_10 = arith.constant 0 : index
      %14 = vector.load %arg5[%c0_8, %c0_9, %c0_10] : memref<1x2x2xf32, #tpu.memory_space<vmem>>, vector<1x2x2xf32>
      tpu.vector_store %arg5[%c0_8, %c0_9, %c0_10], %13 {strides = array<i32>} : memref<1x2x2xf32, #tpu.memory_space<vmem>>, vector<1x2x2xf32>,
    } else {
    }
    %c1_i32_1 = arith.constant 1 : i32
    %5 = arith.cmpi slt, %1, %c1_i32_1 : i32
    %6 = arith.extui %5 : i1 to i32
    %c0_i32_2 = arith.constant 0 : i32
    %7 = arith.cmpi ne, %6, %c0_i32_2 : i32
    scf.if %7 {
      %c0 = arith.constant 0 : index
      %c0_5 = arith.constant 0 : index
      %11 = vector.load %arg2[%c0, %c0_5] : memref<2x1024xf32, #tpu.memory_space<vmem>>, vector<2x1024xf32>
      %cst = arith.constant dense<0.000000e+00> : vector<2x2xf32>
      %12 = tpu.matmul %11, %11, %cst {dimension_numbers = #tpu.dot_dimension_numbers<[1], [1], [0], [0], [0, 0, 1, 0], [], []>} : vector<2x1024xf32>, vector<2x1024xf32>, vector<2x2xf32> -> vector<2x2xf32>
      %c0_6 = arith.constant 0 : index
      %c0_7 = arith.constant 0 : index
      %c0_8 = arith.constant 0 : index
      %13 = vector.load %arg4[%c0_6, %c0_7, %c0_8] : memref<1x2x2xf32, #tpu.memory_space<vmem>>, vector<1x2x2xf32>
      %14 = vector.shape_cast %12 : vector<2x2xf32> to vector<1x2x2xf32>
      %15 = arith.addf %13, %14 : vector<1x2x2xf32>
      %c0_9 = arith.constant 0 : index
      %c0_10 = arith.constant 0 : index
      %c0_11 = arith.constant 0 : index
      %16 = vector.load %arg4[%c0_9, %c0_10, %c0_11] : memref<1x2x2xf32, #tpu.memory_space<vmem>>, vector<1x2x2xf32>
      tpu.vector_store %arg4[%c0_9, %c0_10, %c0_11], %15 {strides = array<i32>} : memref<1x2x2xf32, #tpu.memory_space<vmem>>, vector<1x2x2xf32>,
    } else {
    }
    %c1_i32_3 = arith.constant 1 : i32
    %8 = arith.cmpi slt, %1, %c1_i32_3 : i32
    %9 = arith.extui %8 : i1 to i32
    %c0_i32_4 = arith.constant 0 : i32
    %10 = arith.cmpi ne, %9, %c0_i32_4 : i32
    scf.if %10 {
      %c0 = arith.constant 0 : index
      %c0_5 = arith.constant 0 : index
      %11 = vector.load %arg3[%c0, %c0_5] : memref<2x1024xf32, #tpu.memory_space<vmem>>, vector<2x1024xf32>
      %cst = arith.constant dense<0.000000e+00> : vector<2x2xf32>
      %12 = tpu.matmul %11, %11, %cst {dimension_numbers = #tpu.dot_dimension_numbers<[1], [1], [0], [0], [0, 0, 1, 0], [], []>} : vector<2x1024xf32>, vector<2x1024xf32>, vector<2x2xf32> -> vector<2x2xf32>
      %c0_6 = arith.constant 0 : index
      %c0_7 = arith.constant 0 : index
      %c0_8 = arith.constant 0 : index
      %13 = vector.load %arg5[%c0_6, %c0_7, %c0_8] : memref<1x2x2xf32, #tpu.memory_space<vmem>>, vector<1x2x2xf32>
      %14 = vector.shape_cast %12 : vector<2x2xf32> to vector<1x2x2xf32>
      %15 = arith.addf %13, %14 : vector<1x2x2xf32>
      %c0_9 = arith.constant 0 : index
      %c0_10 = arith.constant 0 : index
      %c0_11 = arith.constant 0 : index
      %16 = vector.load %arg5[%c0_9, %c0_10, %c0_11] : memref<1x2x2xf32, #tpu.memory_space<vmem>>, vector<1x2x2xf32>
      tpu.vector_store %arg5[%c0_9, %c0_10, %c0_11], %15 {strides = array<i32>} : memref<1x2x2xf32, #tpu.memory_space<vmem>>, vector<1x2x2xf32>,
    } else {
    }
    return
  }
  func.func @transform_0(%arg0: i32, %arg1: i32) -> (i32, i32) {
    %c1_i32 = arith.constant 1 : i32
    %0 = arith.muli %arg0, %c1_i32 : i32
    %1 = arith.addi %0, %arg1 : i32
    %c0_i32 = arith.constant 0 : i32
    %2 = arith.minsi %1, %c0_i32 : i32
    %c0_i32_0 = arith.constant 0 : i32
    %c0_i32_1 = arith.constant 0 : i32
    return %c0_i32_0, %2 : i32, i32
  }
  func.func @transform_1(%arg0: i32, %arg1: i32) -> (i32, i32) {
    %c1_i32 = arith.constant 1 : i32
    %0 = arith.muli %arg0, %c1_i32 : i32
    %1 = arith.addi %0, %arg1 : i32
    %c0_i32 = arith.constant 0 : i32
    %2 = arith.minsi %1, %c0_i32 : i32
    %c0_i32_0 = arith.constant 0 : i32
    %c0_i32_1 = arith.constant 0 : i32
    return %c0_i32_0, %2 : i32, i32
  }
  func.func @transform_2(%arg0: i32, %arg1: i32) -> (i32, i32, i32) {
    %c0_i32 = arith.constant 0 : i32
    %c0_i32_0 = arith.constant 0 : i32
    %c0_i32_1 = arith.constant 0 : i32
    return %arg0, %c0_i32, %c0_i32_0 : i32, i32, i32
  }
  func.func @transform_3(%arg0: i32, %arg1: i32) -> (i32, i32, i32) {
    %c0_i32 = arith.constant 0 : i32
    %c0_i32_0 = arith.constant 0 : i32
    %c0_i32_1 = arith.constant 0 : i32
    return %arg0, %c0_i32, %c0_i32_0 : i32, i32, i32
  }
}

</mosaic_0001>

<llo_original>
// kernel: diff_loss.1
$region0: #{diff_loss.1}
  #allocation0 [shape = 'u32[]', space=smem, size = 0x4, offset = 0x4, fixed_abs, tag = 'smem constant byte address 0x4 - core index']
  #allocation1 [shape = 'u32[72,128]{1,0:T(1,128)}', space=vmem, size = 0x9000, scoped, tag = 'internal scratch']
  %s0 = inlined_call_operand.vmem [shape: f32[2,1024], index: 0, kind: input, shape index: {}]
  %s1 = inlined_call_operand.vmem [shape: f32[2,1024], index: 1, kind: input, shape index: {}]
  %s2 = inlined_call_operand.vmem [shape: f32[2,2,2], index: 2, kind: output, shape index: {0}]
  %s3 = inlined_call_operand.vmem [shape: f32[2,2,2], index: 3, kind: output, shape index: {1}]
  %4 = xla_tuple %s2, %s3
  %s5 = sld [smem:[#allocation0]]
  $region57: #{diff_loss.1} parent=0
    _
  %s7 = ssub.s32 1, %s5
  %s8 = scalar_select 0, %s7, %s5
  loop: start=0, step=1, limit=4
  $region2: #{diff_loss.1} parent=0 // loop_pre_header
    _
  $region3: #{diff_loss.1} parent=0 // loop_header
    %s10 = sphi 0, %s14
    %p11 = scmp.ge.s32.totalorder %s10, 4
    %s17 = sphi 0, %s29
    %s18 = sphi 0, %s25
    %s19 = sphi 0, %s17
    %s20 = sphi 0, %s18
    %s21 = sphi 0, %s19
    %s22 = sphi 0, %s20
    %s38 = sphi 0, %s40
    %s41 = sphi 0, %s38
    %s42 = sphi 0, %s41
    %s58 = sphi 0, %s42
    %s70 = sphi 0, %s72
    %s73 = sphi 0, %s70
    %s74 = sphi 0, %s73
    %s90 = sphi 0, %s74
    %s96 = sphi 0, %s98
    %s99 = sphi 0, %s96
    %s100 = sphi 0, %s99
    %s116 = sphi 0, %s100
    %s122 = sphi 0, %s124
    %s125 = sphi 0, %s122
    %s126 = sphi 0, %s125
    %s142 = sphi 0, %s126
  $region4: #{diff_loss.1} parent=0 // loop_header_branch
    %13 = sbr.rel (%p11) target = $region8
  $region5: #{diff_loss.1} parent=0 // loop_body
    %s15 = ssub.s32 %s10, 1
    %s16 = ssub.s32 %s10, 2
    %s23 = sadd.s32 1, %s18
    %p24 = scmp.ge.s32.totalorder %s23, 1
    %s25 = scalar_select %p24, 0, %s23
    %s26 = sadd.s32 1, %s17
    %s27 = scalar_select %p24, %s26, %s17
    %p28 = scmp.ge.s32.totalorder %s27, 2
    %s29 = scalar_select %p28, 0, %s27
    %s30 = sadd.s32 %s17, %s18
    %p31 = scmp.lt.s32.totalorder %s30, 0
    %s32 = scalar_select %p31, %s30, 0
    %s33 = sadd.s32 %s29, %s25
    %p34 = scmp.lt.s32.totalorder %s33, 0
    %s35 = scalar_select %p34, %s33, 0
    %s36 = ssub.s32 %s32, %s35
    %p37 = scmp.eq.s32.totalorder %s36, 0
    %s39 = sadd.s32 %s38, 1
    %s40 = scalar_select %p37, %s38, %s39
    %p43 = pneg %p37
    %p44 = scmp.eq.s32.totalorder %s10, 1
    %p45 = por %p43, %p44
    %p46 = scmp.ne.s32.totalorder %s38, %s41
    %p47 = scmp.eq.s32.totalorder %s10, 0
    %p48 = por %p46, %p47
    %p49 = scmp.ne.s32.totalorder %s38, %s41
    %p50 = scmp.eq.s32.totalorder %s15, 1
    %p51 = por %p49, %p50
    %p52 = scmp.ne.s32.totalorder %s41, %s42
    %p53 = scmp.eq.s32.totalorder %s15, 0
    %p54 = por %p52, %p53
    %p55 = scmp.ne.s32.totalorder %s41, %s42
    %p56 = scmp.eq.s32.totalorder %s16, 1
    %p57 = por %p55, %p56
    %p59 = scmp.ne.s32.totalorder %s42, %s58
    %p60 = scmp.eq.s32.totalorder %s16, 0
    %p61 = por %p59, %p60
    %s62 = sadd.s32 %s17, %s18
    %p63 = scmp.lt.s32.totalorder %s62, 0
    %s64 = scalar_select %p63, %s62, 0
    %s65 = sadd.s32 %s29, %s25
    %p66 = scmp.lt.s32.totalorder %s65, 0
    %s67 = scalar_select %p66, %s65, 0
    %s68 = ssub.s32 %s64, %s67
    %p69 = scmp.eq.s32.totalorder %s68, 0
    %s71 = sadd.s32 %s70, 1
    %s72 = scalar_select %p69, %s70, %s71
    %p75 = pneg %p69
    %p76 = scmp.eq.s32.totalorder %s10, 1
    %p77 = por %p75, %p76
    %p78 = scmp.ne.s32.totalorder %s70, %s73
    %p79 = scmp.eq.s32.totalorder %s10, 0
    %p80 = por %p78, %p79
    %p81 = scmp.ne.s32.totalorder %s70, %s73
    %p82 = scmp.eq.s32.totalorder %s15, 1
    %p83 = por %p81, %p82
    %p84 = scmp.ne.s32.totalorder %s73, %s74
    %p85 = scmp.eq.s32.totalorder %s15, 0
    %p86 = por %p84, %p85
    %p87 = scmp.ne.s32.totalorder %s73, %s74
    %p88 = scmp.eq.s32.totalorder %s16, 1
    %p89 = por %p87, %p88
    %p91 = scmp.ne.s32.totalorder %s74, %s90
    %p92 = scmp.eq.s32.totalorder %s16, 0
    %p93 = por %p91, %p92
    %s94 = ssub.s32 %s17, %s29
    %p95 = scmp.eq.s32.totalorder %s94, 0
    %s97 = sadd.s32 %s96, 1
    %s98 = scalar_select %p95, %s96, %s97
    %p101 = pneg %p95
    %p102 = scmp.eq.s32.totalorder %s10, 1
    %p103 = por %p101, %p102
    %p104 = scmp.ne.s32.totalorder %s96, %s99
    %p105 = scmp.eq.s32.totalorder %s10, 0
    %p106 = por %p104, %p105
    %p107 = scmp.ne.s32.totalorder %s96, %s99
    %p108 = scmp.eq.s32.totalorder %s15, 1
    %p109 = por %p107, %p108
    %p110 = scmp.ne.s32.totalorder %s99, %s100
    %p111 = scmp.eq.s32.totalorder %s15, 0
    %p112 = por %p110, %p111
    %p113 = scmp.ne.s32.totalorder %s99, %s100
    %p114 = scmp.eq.s32.totalorder %s16, 1
    %p115 = por %p113, %p114
    %p117 = scmp.ne.s32.totalorder %s100, %s116
    %p118 = scmp.eq.s32.totalorder %s16, 0
    %p119 = por %p117, %p118
    %s120 = ssub.s32 %s17, %s29
    %p121 = scmp.eq.s32.totalorder %s120, 0
    %s123 = sadd.s32 %s122, 1
    %s124 = scalar_select %p121, %s122, %s123
    %p127 = pneg %p121
    %p128 = scmp.eq.s32.totalorder %s10, 1
    %p129 = por %p127, %p128
    %p130 = scmp.ne.s32.totalorder %s122, %s125
    %p131 = scmp.eq.s32.totalorder %s10, 0
    %p132 = por %p130, %p131
    %p133 = scmp.ne.s32.totalorder %s122, %s125
    %p134 = scmp.eq.s32.totalorder %s15, 1
    %p135 = por %p133, %p134
    %p136 = scmp.ne.s32.totalorder %s125, %s126
    %p137 = scmp.eq.s32.totalorder %s15, 0
    %p138 = por %p136, %p137
    %p139 = scmp.ne.s32.totalorder %s125, %s126
    %p140 = scmp.eq.s32.totalorder %s16, 1
    %p141 = por %p139, %p140
    %p143 = scmp.ne.s32.totalorder %s126, %s142
    %p144 = scmp.eq.s32.totalorder %s16, 0
    %p145 = por %p143, %p144
    %p146 = scmp.le.s32.totalorder 1, %s10
    %p147 = scmp.lt.s32.totalorder %s10, 3
    %p148 = pnand %p146, %p147
    %p149 = pneg %p148
    // Predicated region
    $region9: #{diff_loss.1} parent=5 // pred_check
      _
    $region10: #{diff_loss.1} parent=5 // pred_check_branch
      %151 = sbr.rel (%p148) target = $region12
    $region11: #{diff_loss.1} parent=5 // pred_region
      %s152 = ssub.s32 %s10, 1
    $region12: #{diff_loss.1} parent=5 // pred_fallthru
      _
    %p153 = scmp.lt.s32.totalorder %s10, 2
    // Predicated region
    $region13: #{diff_loss.1} parent=5 // pred_check
      %p154 = pneg %p153
    $region14: #{diff_loss.1} parent=5 // pred_check_branch
      %156 = sbr.rel (%p154) target = $region16
    $region15: #{diff_loss.1} parent=5 // pred_region
      // Predicated region
      $region17: #{diff_loss.1} parent=15 // pred_check
        %p157 = pneg %p48
      $region18: #{diff_loss.1} parent=15 // pred_check_branch
        %159 = sbr.rel (%p157) target = $region20
      $region19: #{diff_loss.1} parent=15 // pred_region
        %s160 = sadd.s32 %s17, %s18
        %p161 = scmp.lt.s32.totalorder %s160, 0
        %s162 = scalar_select %p161, %s160, 0
        %s163 = smul.u32 8, %s162
        %p164 = scmp.lt.s32.totalorder %s163, 7
        %s165 = scalar_select %p164, %s163, 7
        %s166 = smul.addr %s165, 2
        %s167 = scalar_lea.vmem %s0, %s166
        %s168 = sadd.s32 %s17, %s18
        %p169 = scmp.lt.s32.totalorder %s168, 0
        %s170 = scalar_select %p169, %s168, 0
        %s171 = smul.u32 8, %s170
      $region20: #{diff_loss.1} parent=15 // pred_fallthru
        _
      // Predicated region
      $region21: #{diff_loss.1} parent=15 // pred_check
        %p172 = pneg %p80
      $region22: #{diff_loss.1} parent=15 // pred_check_branch
        %174 = sbr.rel (%p172) target = $region24
      $region23: #{diff_loss.1} parent=15 // pred_region
        %s175 = sadd.s32 %s17, %s18
        %p176 = scmp.lt.s32.totalorder %s175, 0
        %s177 = scalar_select %p176, %s175, 0
        %s178 = smul.u32 8, %s177
        %p179 = scmp.lt.s32.totalorder %s178, 7
        %s180 = scalar_select %p179, %s178, 7
        %s181 = smul.addr %s180, 2
        %s182 = scalar_lea.vmem %s1, %s181
        %s183 = sadd.s32 %s17, %s18
        %p184 = scmp.lt.s32.totalorder %s183, 0
        %s185 = scalar_select %p184, %s183, 0
        %s186 = smul.u32 8, %s185
      $region24: #{diff_loss.1} parent=15 // pred_fallthru
        _
    $region16: #{diff_loss.1} parent=5 // pred_fallthru
      _
    %p187 = scmp.le.s32.totalorder 1, %s10
    %p188 = scmp.lt.s32.totalorder %s10, 3
    %p189 = pnand %p187, %p188
    %p190 = pneg %p189
    // Predicated region
    $region25: #{diff_loss.1} parent=5 // pred_check
      _
    $region26: #{diff_loss.1} parent=5 // pred_check_branch
      %192 = sbr.rel (%p189) target = $region28
    $region27: #{diff_loss.1} parent=5 // pred_region
      %s193 = ssub.s32 %s10, 1
      %s194 = sadd.s32 %s19, %s20
      %p195 = scmp.lt.s32.totalorder %s194, 0
      %s196 = scalar_select %p195, %s194, 0
      %s197 = smul.u32 8, %s196
      %p198 = scmp.lt.s32.totalorder %s197, 7
      %s199 = scalar_select %p198, %s197, 7
      %s200 = smul.addr %s199, 2
      %s201 = scalar_lea.vmem %s0, %s200
      %p202 = pneg %p54
      %p203 = pneg %p51
      %s204 = sadd.s32 %s19, %s20
      %p205 = scmp.lt.s32.totalorder %s204, 0
      %s206 = scalar_select %p205, %s204, 0
      %s207 = smul.u32 8, %s206
      %p208 = scmp.lt.s32.totalorder %s207, 7
      %s209 = scalar_select %p208, %s207, 7
      %s210 = smul.addr %s209, 2
      %s211 = scalar_lea.vmem %s1, %s210
      %p212 = pneg %p86
      %p213 = pneg %p83
      %p214 = pneg %p112
      %p215 = pneg %p109
      %p216 = scmp.lt.s32.totalorder %s19, 1
      %s217 = scalar_select %p216, %s19, 1
      %s218 = smul.addr %s217, 2
      %s219 = scalar_lea.vmem %s2, %s218
      %p220 = pneg %p138
      %p221 = pneg %p135
      %p222 = scmp.lt.s32.totalorder %s19, 1
      %s223 = scalar_select %p222, %s19, 1
      %s224 = smul.addr %s223, 2
      %s225 = scalar_lea.vmem %s3, %s224
      %s226 = sadd.s32 %s19, %s20
      %p227 = scmp.lt.s32.totalorder %s226, 0
      %s228 = scalar_select %p227, %s226, 0
      %s229 = smul.u32 8, %s228
      %p230 = scmp.lt.s32.totalorder %s229, 7
      %s231 = scalar_select %p230, %s229, 7
      %s232 = smul.addr %s231, 2
      %s233 = scalar_lea.vmem %s0, %s232
      %s234 = sadd.s32 %s19, %s20
      %p235 = scmp.lt.s32.totalorder %s234, 0
      %s236 = scalar_select %p235, %s234, 0
      %s237 = smul.u32 8, %s236
      %s238 = sadd.s32 %s19, %s20
      %p239 = scmp.lt.s32.totalorder %s238, 0
      %s240 = scalar_select %p239, %s238, 0
      %s241 = smul.u32 8, %s240
      %p242 = scmp.lt.s32.totalorder %s241, 7
      %s243 = scalar_select %p242, %s241, 7
      %s244 = smul.addr %s243, 2
      %s245 = scalar_lea.vmem %s1, %s244
      %s246 = sadd.s32 %s19, %s20
      %p247 = scmp.lt.s32.totalorder %s246, 0
      %s248 = scalar_select %p247, %s246, 0
      %s249 = smul.u32 8, %s248
      %p250 = scmp.lt.s32.totalorder %s19, 1
      %s251 = scalar_select %p250, %s19, 1
      %s252 = smul.addr %s251, 2
      %s253 = scalar_lea.vmem %s2, %s252
      %p254 = scmp.lt.s32.totalorder %s19, 1
      %s255 = scalar_select %p254, %s19, 1
      %s256 = smul.addr %s255, 2
      %s257 = scalar_lea.vmem %s3, %s256
      %s258 = sadd.s32 %s19, %s20
      %p259 = scmp.eq.s32.totalorder %s20, 0
      // Predicated region
      $region29: #{diff_loss.1} parent=27 // pred_check
        %p260 = pneg %p259
      $region30: #{diff_loss.1} parent=27 // pred_check_branch
        %262 = sbr.rel (%p260) target = $region32
      $region31: #{diff_loss.1} parent=27 // pred_region
        %vm263 = vcmask 9216
        %264 = vst.msk [vmem:[%s253] sm:$0x3] %vm263, 0.0
        %265 = vst.msk [vmem:[%s257] sm:$0x3] %vm263, 0.0
      $region32: #{diff_loss.1} parent=27 // pred_fallthru
        _
      %p266 = scmp.lt.s32.totalorder %s258, 1
      // Predicated region
      $region33: #{diff_loss.1} parent=27 // pred_check
        %p267 = pneg %p266
      $region34: #{diff_loss.1} parent=27 // pred_check_branch
        %269 = sbr.rel (%p267) target = $region36
      $region35: #{diff_loss.1} parent=27 // pred_region
        %v270 = vld [vmem:[%s233] sm:$0xff]
        %v271 = vld [vmem:[%s233 + $0x8] sm:$0xff]
        %274 = vst [vmem:[#allocation1] ss:$4 sm:$0xff] %v270
        %s275 = scalar_lea.vmem [#allocation1], 32
        %276 = vst [vmem:[%s275] ss:$4 sm:$0xff] %v271
        %v277 = vld.sshfl [vmem:[#allocation1] sm:$0xff pattern:$0x73625140]
        %v278 = vld.sshfl [vmem:[#allocation1 + $0x8] sm:$0xff pattern:$0x73625140]
        %v279 = vld.sshfl [vmem:[#allocation1 + $0x10] sm:$0xff pattern:$0x73625140]
        %v280 = vld.sshfl [vmem:[#allocation1 + $0x18] sm:$0xff pattern:$0x73625140]
        %v281 = vld.sshfl [vmem:[#allocation1 + $0x20] sm:$0xff pattern:$0x73625140]
        %v282 = vld.sshfl [vmem:[#allocation1 + $0x28] sm:$0xff pattern:$0x73625140]
        %v283 = vld.sshfl [vmem:[#allocation1 + $0x30] sm:$0xff pattern:$0x73625140]
        %v284 = vld.sshfl [vmem:[#allocation1 + $0x38] sm:$0xff pattern:$0x73625140]
        %293 = vst [vmem:[#allocation1] ss:$4 sm:$0xff] %v270
        %s294 = scalar_lea.vmem [#allocation1], 32
        %295 = vst [vmem:[%s294] ss:$4 sm:$0xff] %v271
        %v296 = vld.sshfl [vmem:[#allocation1] sm:$0xff pattern:$0x73625140]
        %v297 = vld.sshfl [vmem:[#allocation1 + $0x8] sm:$0xff pattern:$0x73625140]
        %v298 = vld.sshfl [vmem:[#allocation1 + $0x10] sm:$0xff pattern:$0x73625140]
        %v299 = vld.sshfl [vmem:[#allocation1 + $0x18] sm:$0xff pattern:$0x73625140]
        %v300 = vld.sshfl [vmem:[#allocation1 + $0x20] sm:$0xff pattern:$0x73625140]
        %v301 = vld.sshfl [vmem:[#allocation1 + $0x28] sm:$0xff pattern:$0x73625140]
        %v302 = vld.sshfl [vmem:[#allocation1 + $0x30] sm:$0xff pattern:$0x73625140]
        %v303 = vld.sshfl [vmem:[#allocation1 + $0x38] sm:$0xff pattern:$0x73625140]
        %312 = vmatpush.xpose.msra.mxu0 0.0
        %313 = vmatpush.xpose.msra.mxu0 0.0
        %314 = vmatpush.xpose.msra.mxu0 0.0
        %315 = vmatpush.xpose.msra.mxu0 0.0
        %316 = vmatpush.xpose.msra.mxu0 0.0
        %317 = vmatpush.xpose.msra.mxu0 0.0
        %318 = vmatpush.xpose.msra.mxu0 0.0
        %319 = vmatpush.xpose.msra.mxu0 0.0
        %320 = vmatpush.xpose.msra.mxu0 0.0
        %321 = vmatpush.xpose.msra.mxu0 0.0
        %322 = vmatpush.xpose.msra.mxu0 0.0
        %323 = vmatpush.xpose.msra.mxu0 0.0
        %324 = vmatpush.xpose.msra.mxu0 0.0
        %325 = vmatpush.xpose.msra.mxu0 0.0
        %326 = vmatpush.xpose.msra.mxu0 0.0
        %327 = vmatpush.xpose.msra.mxu0 %v296
        %328 = vmatmul.f32.gmra.mxu0 %v277
        %v329 = vpop.f32.mrf.mxu0
        %v330 = vadd.f32 0.0, %v329
        %331 = vdwg.mxu0
        %332 = vmatpush.xpose.msra.mxu0 0.0
        %333 = vmatpush.xpose.msra.mxu0 0.0
        %334 = vmatpush.xpose.msra.mxu0 0.0
        %335 = vmatpush.xpose.msra.mxu0 0.0
        %336 = vmatpush.xpose.msra.mxu0 0.0
        %337 = vmatpush.xpose.msra.mxu0 0.0
        %338 = vmatpush.xpose.msra.mxu0 0.0
        %339 = vmatpush.xpose.msra.mxu0 0.0
        %340 = vmatpush.xpose.msra.mxu0 0.0
        %341 = vmatpush.xpose.msra.mxu0 0.0
        %342 = vmatpush.xpose.msra.mxu0 0.0
        %343 = vmatpush.xpose.msra.mxu0 0.0
        %344 = vmatpush.xpose.msra.mxu0 0.0
        %345 = vmatpush.xpose.msra.mxu0 0.0
        %346 = vmatpush.xpose.msra.mxu0 0.0
        %347 = vmatpush.xpose.msra.mxu0 %v297
        %348 = vmatmul.f32.gmra.mxu0 %v278
        %v349 = vpop.f32.mrf.mxu0
        %v350 = vadd.f32 %v330, %v349
        %351 = vdwg.mxu0
        %352 = vmatpush.xpose.msra.mxu0 0.0
        %353 = vmatpush.xpose.msra.mxu0 0.0
        %354 = vmatpush.xpose.msra.mxu0 0.0
        %355 = vmatpush.xpose.msra.mxu0 0.0
        %356 = vmatpush.xpose.msra.mxu0 0.0
        %357 = vmatpush.xpose.msra.mxu0 0.0
        %358 = vmatpush.xpose.msra.mxu0 0.0
        %359 = vmatpush.xpose.msra.mxu0 0.0
        %360 = vmatpush.xpose.msra.mxu0 0.0
        %361 = vmatpush.xpose.msra.mxu0 0.0
        %362 = vmatpush.xpose.msra.mxu0 0.0
        %363 = vmatpush.xpose.msra.mxu0 0.0
        %364 = vmatpush.xpose.msra.mxu0 0.0
        %365 = vmatpush.xpose.msra.mxu0 0.0
        %366 = vmatpush.xpose.msra.mxu0 0.0
        %367 = vmatpush.xpose.msra.mxu0 %v298
        %368 = vmatmul.f32.gmra.mxu0 %v279
        %v369 = vpop.f32.mrf.mxu0
        %v370 = vadd.f32 %v350, %v369
        %371 = vdwg.mxu0
        %372 = vmatpush.xpose.msra.mxu0 0.0
        %373 = vmatpush.xpose.msra.mxu0 0.0
        %374 = vmatpush.xpose.msra.mxu0 0.0
        %375 = vmatpush.xpose.msra.mxu0 0.0
        %376 = vmatpush.xpose.msra.mxu0 0.0
        %377 = vmatpush.xpose.msra.mxu0 0.0
        %378 = vmatpush.xpose.msra.mxu0 0.0
        %379 = vmatpush.xpose.msra.mxu0 0.0
        %380 = vmatpush.xpose.msra.mxu0 0.0
        %381 = vmatpush.xpose.msra.mxu0 0.0
        %382 = vmatpush.xpose.msra.mxu0 0.0
        %383 = vmatpush.xpose.msra.mxu0 0.0
        %384 = vmatpush.xpose.msra.mxu0 0.0
        %385 = vmatpush.xpose.msra.mxu0 0.0
        %386 = vmatpush.xpose.msra.mxu0 0.0
        %387 = vmatpush.xpose.msra.mxu0 %v299
        %388 = vmatmul.f32.gmra.mxu0 %v280
        %v389 = vpop.f32.mrf.mxu0
        %v390 = vadd.f32 %v370, %v389
        %391 = vdwg.mxu0
        %392 = vmatpush.xpose.msra.mxu0 0.0
        %393 = vmatpush.xpose.msra.mxu0 0.0
        %394 = vmatpush.xpose.msra.mxu0 0.0
        %395 = vmatpush.xpose.msra.mxu0 0.0
        %396 = vmatpush.xpose.msra.mxu0 0.0
        %397 = vmatpush.xpose.msra.mxu0 0.0
        %398 = vmatpush.xpose.msra.mxu0 0.0
        %399 = vmatpush.xpose.msra.mxu0 0.0
        %400 = vmatpush.xpose.msra.mxu0 0.0
        %401 = vmatpush.xpose.msra.mxu0 0.0
        %402 = vmatpush.xpose.msra.mxu0 0.0
        %403 = vmatpush.xpose.msra.mxu0 0.0
        %404 = vmatpush.xpose.msra.mxu0 0.0
        %405 = vmatpush.xpose.msra.mxu0 0.0
        %406 = vmatpush.xpose.msra.mxu0 0.0
        %407 = vmatpush.xpose.msra.mxu0 %v300
        %408 = vmatmul.f32.gmra.mxu0 %v281
        %v409 = vpop.f32.mrf.mxu0
        %v410 = vadd.f32 %v390, %v409
        %411 = vdwg.mxu0
        %412 = vmatpush.xpose.msra.mxu0 0.0
        %413 = vmatpush.xpose.msra.mxu0 0.0
        %414 = vmatpush.xpose.msra.mxu0 0.0
        %415 = vmatpush.xpose.msra.mxu0 0.0
        %416 = vmatpush.xpose.msra.mxu0 0.0
        %417 = vmatpush.xpose.msra.mxu0 0.0
        %418 = vmatpush.xpose.msra.mxu0 0.0
        %419 = vmatpush.xpose.msra.mxu0 0.0
        %420 = vmatpush.xpose.msra.mxu0 0.0
        %421 = vmatpush.xpose.msra.mxu0 0.0
        %422 = vmatpush.xpose.msra.mxu0 0.0
        %423 = vmatpush.xpose.msra.mxu0 0.0
        %424 = vmatpush.xpose.msra.mxu0 0.0
        %425 = vmatpush.xpose.msra.mxu0 0.0
        %426 = vmatpush.xpose.msra.mxu0 0.0
        %427 = vmatpush.xpose.msra.mxu0 %v301
        %428 = vmatmul.f32.gmra.mxu0 %v282
        %v429 = vpop.f32.mrf.mxu0
        %v430 = vadd.f32 %v410, %v429
        %431 = vdwg.mxu0
        %432 = vmatpush.xpose.msra.mxu0 0.0
        %433 = vmatpush.xpose.msra.mxu0 0.0
        %434 = vmatpush.xpose.msra.mxu0 0.0
        %435 = vmatpush.xpose.msra.mxu0 0.0
        %436 = vmatpush.xpose.msra.mxu0 0.0
        %437 = vmatpush.xpose.msra.mxu0 0.0
        %438 = vmatpush.xpose.msra.mxu0 0.0
        %439 = vmatpush.xpose.msra.mxu0 0.0
        %440 = vmatpush.xpose.msra.mxu0 0.0
        %441 = vmatpush.xpose.msra.mxu0 0.0
        %442 = vmatpush.xpose.msra.mxu0 0.0
        %443 = vmatpush.xpose.msra.mxu0 0.0
        %444 = vmatpush.xpose.msra.mxu0 0.0
        %445 = vmatpush.xpose.msra.mxu0 0.0
        %446 = vmatpush.xpose.msra.mxu0 0.0
        %447 = vmatpush.xpose.msra.mxu0 %v302
        %448 = vmatmul.f32.gmra.mxu0 %v283
        %v449 = vpop.f32.mrf.mxu0
        %v450 = vadd.f32 %v430, %v449
        %451 = vdwg.mxu0
        %452 = vmatpush.xpose.msra.mxu0 0.0
        %453 = vmatpush.xpose.msra.mxu0 0.0
        %454 = vmatpush.xpose.msra.mxu0 0.0
        %455 = vmatpush.xpose.msra.mxu0 0.0
        %456 = vmatpush.xpose.msra.mxu0 0.0
        %457 = vmatpush.xpose.msra.mxu0 0.0
        %458 = vmatpush.xpose.msra.mxu0 0.0
        %459 = vmatpush.xpose.msra.mxu0 0.0
        %460 = vmatpush.xpose.msra.mxu0 0.0
        %461 = vmatpush.xpose.msra.mxu0 0.0
        %462 = vmatpush.xpose.msra.mxu0 0.0
        %463 = vmatpush.xpose.msra.mxu0 0.0
        %464 = vmatpush.xpose.msra.mxu0 0.0
        %465 = vmatpush.xpose.msra.mxu0 0.0
        %466 = vmatpush.xpose.msra.mxu0 0.0
        %467 = vmatpush.xpose.msra.mxu0 %v303
        %468 = vmatmul.f32.gmra.mxu0 %v284
        %v469 = vpop.f32.mrf.mxu0
        %v470 = vadd.f32 %v450, %v469
        %471 = vdwg.mxu0
        %v472 = vld [vmem:[%s253] sm:$0x3]
        %v473 = vadd.f32 %v472, %v470
        %vm474 = vcmask 9216
        %475 = vst.msk [vmem:[%s253] sm:$0x3] %vm474, %v473
        %v476 = vld [vmem:[%s245] sm:$0xff]
        %v477 = vld [vmem:[%s245 + $0x8] sm:$0xff]
        %480 = vst [vmem:[#allocation1] ss:$4 sm:$0xff] %v476
        %s481 = scalar_lea.vmem [#allocation1], 32
        %482 = vst [vmem:[%s481] ss:$4 sm:$0xff] %v477
        %v483 = vld.sshfl [vmem:[#allocation1] sm:$0xff pattern:$0x73625140]
        %v484 = vld.sshfl [vmem:[#allocation1 + $0x8] sm:$0xff pattern:$0x73625140]
        %v485 = vld.sshfl [vmem:[#allocation1 + $0x10] sm:$0xff pattern:$0x73625140]
        %v486 = vld.sshfl [vmem:[#allocation1 + $0x18] sm:$0xff pattern:$0x73625140]
        %v487 = vld.sshfl [vmem:[#allocation1 + $0x20] sm:$0xff pattern:$0x73625140]
        %v488 = vld.sshfl [vmem:[#allocation1 + $0x28] sm:$0xff pattern:$0x73625140]
        %v489 = vld.sshfl [vmem:[#allocation1 + $0x30] sm:$0xff pattern:$0x73625140]
        %v490 = vld.sshfl [vmem:[#allocation1 + $0x38] sm:$0xff pattern:$0x73625140]
        %499 = vst [vmem:[#allocation1] ss:$4 sm:$0xff] %v476
        %s500 = scalar_lea.vmem [#allocation1], 32
        %501 = vst [vmem:[%s500] ss:$4 sm:$0xff] %v477
        %v502 = vld.sshfl [vmem:[#allocation1] sm:$0xff pattern:$0x73625140]
        %v503 = vld.sshfl [vmem:[#allocation1 + $0x8] sm:$0xff pattern:$0x73625140]
        %v504 = vld.sshfl [vmem:[#allocation1 + $0x10] sm:$0xff pattern:$0x73625140]
        %v505 = vld.sshfl [vmem:[#allocation1 + $0x18] sm:$0xff pattern:$0x73625140]
        %v506 = vld.sshfl [vmem:[#allocation1 + $0x20] sm:$0xff pattern:$0x73625140]
        %v507 = vld.sshfl [vmem:[#allocation1 + $0x28] sm:$0xff pattern:$0x73625140]
        %v508 = vld.sshfl [vmem:[#allocation1 + $0x30] sm:$0xff pattern:$0x73625140]
        %v509 = vld.sshfl [vmem:[#allocation1 + $0x38] sm:$0xff pattern:$0x73625140]
        %518 = vmatpush.xpose.msra.mxu0 0.0
        %519 = vmatpush.xpose.msra.mxu0 0.0
        %520 = vmatpush.xpose.msra.mxu0 0.0
        %521 = vmatpush.xpose.msra.mxu0 0.0
        %522 = vmatpush.xpose.msra.mxu0 0.0
        %523 = vmatpush.xpose.msra.mxu0 0.0
        %524 = vmatpush.xpose.msra.mxu0 0.0
        %525 = vmatpush.xpose.msra.mxu0 0.0
        %526 = vmatpush.xpose.msra.mxu0 0.0
        %527 = vmatpush.xpose.msra.mxu0 0.0
        %528 = vmatpush.xpose.msra.mxu0 0.0
        %529 = vmatpush.xpose.msra.mxu0 0.0
        %530 = vmatpush.xpose.msra.mxu0 0.0
        %531 = vmatpush.xpose.msra.mxu0 0.0
        %532 = vmatpush.xpose.msra.mxu0 0.0
        %533 = vmatpush.xpose.msra.mxu0 %v502
        %534 = vmatmul.f32.gmra.mxu0 %v483
        %v535 = vpop.f32.mrf.mxu0
        %v536 = vadd.f32 0.0, %v535
        %537 = vdwg.mxu0
        %538 = vmatpush.xpose.msra.mxu0 0.0
        %539 = vmatpush.xpose.msra.mxu0 0.0
        %540 = vmatpush.xpose.msra.mxu0 0.0
        %541 = vmatpush.xpose.msra.mxu0 0.0
        %542 = vmatpush.xpose.msra.mxu0 0.0
        %543 = vmatpush.xpose.msra.mxu0 0.0
        %544 = vmatpush.xpose.msra.mxu0 0.0
        %545 = vmatpush.xpose.msra.mxu0 0.0
        %546 = vmatpush.xpose.msra.mxu0 0.0
        %547 = vmatpush.xpose.msra.mxu0 0.0
        %548 = vmatpush.xpose.msra.mxu0 0.0
        %549 = vmatpush.xpose.msra.mxu0 0.0
        %550 = vmatpush.xpose.msra.mxu0 0.0
        %551 = vmatpush.xpose.msra.mxu0 0.0
        %552 = vmatpush.xpose.msra.mxu0 0.0
        %553 = vmatpush.xpose.msra.mxu0 %v503
        %554 = vmatmul.f32.gmra.mxu0 %v484
        %v555 = vpop.f32.mrf.mxu0
        %v556 = vadd.f32 %v536, %v555
        %557 = vdwg.mxu0
        %558 = vmatpush.xpose.msra.mxu0 0.0
        %559 = vmatpush.xpose.msra.mxu0 0.0
        %560 = vmatpush.xpose.msra.mxu0 0.0
        %561 = vmatpush.xpose.msra.mxu0 0.0
        %562 = vmatpush.xpose.msra.mxu0 0.0
        %563 = vmatpush.xpose.msra.mxu0 0.0
        %564 = vmatpush.xpose.msra.mxu0 0.0
        %565 = vmatpush.xpose.msra.mxu0 0.0
        %566 = vmatpush.xpose.msra.mxu0 0.0
        %567 = vmatpush.xpose.msra.mxu0 0.0
        %568 = vmatpush.xpose.msra.mxu0 0.0
        %569 = vmatpush.xpose.msra.mxu0 0.0
        %570 = vmatpush.xpose.msra.mxu0 0.0
        %571 = vmatpush.xpose.msra.mxu0 0.0
        %572 = vmatpush.xpose.msra.mxu0 0.0
        %573 = vmatpush.xpose.msra.mxu0 %v504
        %574 = vmatmul.f32.gmra.mxu0 %v485
        %v575 = vpop.f32.mrf.mxu0
        %v576 = vadd.f32 %v556, %v575
        %577 = vdwg.mxu0
        %578 = vmatpush.xpose.msra.mxu0 0.0
        %579 = vmatpush.xpose.msra.mxu0 0.0
        %580 = vmatpush.xpose.msra.mxu0 0.0
        %581 = vmatpush.xpose.msra.mxu0 0.0
        %582 = vmatpush.xpose.msra.mxu0 0.0
        %583 = vmatpush.xpose.msra.mxu0 0.0
        %584 = vmatpush.xpose.msra.mxu0 0.0
        %585 = vmatpush.xpose.msra.mxu0 0.0
        %586 = vmatpush.xpose.msra.mxu0 0.0
        %587 = vmatpush.xpose.msra.mxu0 0.0
        %588 = vmatpush.xpose.msra.mxu0 0.0
        %589 = vmatpush.xpose.msra.mxu0 0.0
        %590 = vmatpush.xpose.msra.mxu0 0.0
        %591 = vmatpush.xpose.msra.mxu0 0.0
        %592 = vmatpush.xpose.msra.mxu0 0.0
        %593 = vmatpush.xpose.msra.mxu0 %v505
        %594 = vmatmul.f32.gmra.mxu0 %v486
        %v595 = vpop.f32.mrf.mxu0
        %v596 = vadd.f32 %v576, %v595
        %597 = vdwg.mxu0
        %598 = vmatpush.xpose.msra.mxu0 0.0
        %599 = vmatpush.xpose.msra.mxu0 0.0
        %600 = vmatpush.xpose.msra.mxu0 0.0
        %601 = vmatpush.xpose.msra.mxu0 0.0
        %602 = vmatpush.xpose.msra.mxu0 0.0
        %603 = vmatpush.xpose.msra.mxu0 0.0
        %604 = vmatpush.xpose.msra.mxu0 0.0
        %605 = vmatpush.xpose.msra.mxu0 0.0
        %606 = vmatpush.xpose.msra.mxu0 0.0
        %607 = vmatpush.xpose.msra.mxu0 0.0
        %608 = vmatpush.xpose.msra.mxu0 0.0
        %609 = vmatpush.xpose.msra.mxu0 0.0
        %610 = vmatpush.xpose.msra.mxu0 0.0
        %611 = vmatpush.xpose.msra.mxu0 0.0
        %612 = vmatpush.xpose.msra.mxu0 0.0
        %613 = vmatpush.xpose.msra.mxu0 %v506
        %614 = vmatmul.f32.gmra.mxu0 %v487
        %v615 = vpop.f32.mrf.mxu0
        %v616 = vadd.f32 %v596, %v615
        %617 = vdwg.mxu0
        %618 = vmatpush.xpose.msra.mxu0 0.0
        %619 = vmatpush.xpose.msra.mxu0 0.0
        %620 = vmatpush.xpose.msra.mxu0 0.0
        %621 = vmatpush.xpose.msra.mxu0 0.0
        %622 = vmatpush.xpose.msra.mxu0 0.0
        %623 = vmatpush.xpose.msra.mxu0 0.0
        %624 = vmatpush.xpose.msra.mxu0 0.0
        %625 = vmatpush.xpose.msra.mxu0 0.0
        %626 = vmatpush.xpose.msra.mxu0 0.0
        %627 = vmatpush.xpose.msra.mxu0 0.0
        %628 = vmatpush.xpose.msra.mxu0 0.0
        %629 = vmatpush.xpose.msra.mxu0 0.0
        %630 = vmatpush.xpose.msra.mxu0 0.0
        %631 = vmatpush.xpose.msra.mxu0 0.0
        %632 = vmatpush.xpose.msra.mxu0 0.0
        %633 = vmatpush.xpose.msra.mxu0 %v507
        %634 = vmatmul.f32.gmra.mxu0 %v488
        %v635 = vpop.f32.mrf.mxu0
        %v636 = vadd.f32 %v616, %v635
        %637 = vdwg.mxu0
        %638 = vmatpush.xpose.msra.mxu0 0.0
        %639 = vmatpush.xpose.msra.mxu0 0.0
        %640 = vmatpush.xpose.msra.mxu0 0.0
        %641 = vmatpush.xpose.msra.mxu0 0.0
        %642 = vmatpush.xpose.msra.mxu0 0.0
        %643 = vmatpush.xpose.msra.mxu0 0.0
        %644 = vmatpush.xpose.msra.mxu0 0.0
        %645 = vmatpush.xpose.msra.mxu0 0.0
        %646 = vmatpush.xpose.msra.mxu0 0.0
        %647 = vmatpush.xpose.msra.mxu0 0.0
        %648 = vmatpush.xpose.msra.mxu0 0.0
        %649 = vmatpush.xpose.msra.mxu0 0.0
        %650 = vmatpush.xpose.msra.mxu0 0.0
        %651 = vmatpush.xpose.msra.mxu0 0.0
        %652 = vmatpush.xpose.msra.mxu0 0.0
        %653 = vmatpush.xpose.msra.mxu0 %v508
        %654 = vmatmul.f32.gmra.mxu0 %v489
        %v655 = vpop.f32.mrf.mxu0
        %v656 = vadd.f32 %v636, %v655
        %657 = vdwg.mxu0
        %658 = vmatpush.xpose.msra.mxu0 0.0
        %659 = vmatpush.xpose.msra.mxu0 0.0
        %660 = vmatpush.xpose.msra.mxu0 0.0
        %661 = vmatpush.xpose.msra.mxu0 0.0
        %662 = vmatpush.xpose.msra.mxu0 0.0
        %663 = vmatpush.xpose.msra.mxu0 0.0
        %664 = vmatpush.xpose.msra.mxu0 0.0
        %665 = vmatpush.xpose.msra.mxu0 0.0
        %666 = vmatpush.xpose.msra.mxu0 0.0
        %667 = vmatpush.xpose.msra.mxu0 0.0
        %668 = vmatpush.xpose.msra.mxu0 0.0
        %669 = vmatpush.xpose.msra.mxu0 0.0
        %670 = vmatpush.xpose.msra.mxu0 0.0
        %671 = vmatpush.xpose.msra.mxu0 0.0
        %672 = vmatpush.xpose.msra.mxu0 0.0
        %673 = vmatpush.xpose.msra.mxu0 %v509
        %674 = vmatmul.f32.gmra.mxu0 %v490
        %v675 = vpop.f32.mrf.mxu0
        %v676 = vadd.f32 %v656, %v675
        %677 = vdwg.mxu0
        %v678 = vld [vmem:[%s257] sm:$0x3]
        %v679 = vadd.f32 %v678, %v676
        %680 = vst.msk [vmem:[%s257] sm:$0x3] %vm474, %v679
      $region36: #{diff_loss.1} parent=27 // pred_fallthru
        _
      %p681 = scmp.lt.s32.totalorder %s19, 1
      %s682 = scalar_select %p681, %s19, 1
      %s683 = smul.addr %s682, 2
      %s684 = scalar_lea.vmem %s2, %s683
      %p685 = scmp.lt.s32.totalorder %s19, 1
      %s686 = scalar_select %p685, %s19, 1
      %s687 = smul.addr %s686, 2
      %s688 = scalar_lea.vmem %s3, %s687
      // Predicated region
      $region37: #{diff_loss.1} parent=27 // pred_check
        %p689 = pneg %p109
      $region38: #{diff_loss.1} parent=27 // pred_check_branch
        %691 = sbr.rel (%p689) target = $region40
      $region39: #{diff_loss.1} parent=27 // pred_region
        _
      $region40: #{diff_loss.1} parent=27 // pred_fallthru
        _
      // Predicated region
      $region41: #{diff_loss.1} parent=27 // pred_check
        %p692 = pneg %p135
      $region42: #{diff_loss.1} parent=27 // pred_check_branch
        %694 = sbr.rel (%p692) target = $region44
      $region43: #{diff_loss.1} parent=27 // pred_region
        _
      $region44: #{diff_loss.1} parent=27 // pred_fallthru
        _
    $region28: #{diff_loss.1} parent=5 // pred_fallthru
      _
    %p695 = scmp.le.s32.totalorder 2, %s10
    // Predicated region
    $region45: #{diff_loss.1} parent=5 // pred_check
      %p696 = pneg %p695
    $region46: #{diff_loss.1} parent=5 // pred_check_branch
      %698 = sbr.rel (%p696) target = $region48
    $region47: #{diff_loss.1} parent=5 // pred_region
      %s699 = ssub.s32 %s10, 2
      // Predicated region
      $region49: #{diff_loss.1} parent=47 // pred_check
        %p700 = pneg %p115
      $region50: #{diff_loss.1} parent=47 // pred_check_branch
        %702 = sbr.rel (%p700) target = $region52
      $region51: #{diff_loss.1} parent=47 // pred_region
        %p703 = scmp.lt.s32.totalorder %s21, 1
        %s704 = scalar_select %p703, %s21, 1
        %s705 = smul.addr %s704, 2
        %s706 = scalar_lea.vmem %s2, %s705
      $region52: #{diff_loss.1} parent=47 // pred_fallthru
        _
      // Predicated region
      $region53: #{diff_loss.1} parent=47 // pred_check
        %p707 = pneg %p141
      $region54: #{diff_loss.1} parent=47 // pred_check_branch
        %709 = sbr.rel (%p707) target = $region56
      $region55: #{diff_loss.1} parent=47 // pred_region
        %p710 = scmp.lt.s32.totalorder %s21, 1
        %s711 = scalar_select %p710, %s21, 1
        %s712 = smul.addr %s711, 2
        %s713 = scalar_lea.vmem %s3, %s712
      $region56: #{diff_loss.1} parent=47 // pred_fallthru
        _
    $region48: #{diff_loss.1} parent=5 // pred_fallthru
      _
  $region6: #{diff_loss.1} parent=0 // loop_footer
    %s14 = sadd.s32 1, %s10
  $region7: #{diff_loss.1} parent=0 // loop_footer_branch
    %9 = sbr.rel target = $region3
  $region8: #{diff_loss.1} parent=0 // loop_exit
    _

</llo_original>
